<compile_context>
chip_gen: v6e
topology: v6e:2x2x1
jax: 0.10.0
libtpu: 0.0.40
codegen_flags: <defaults>
</compile_context>

<pallas_src>
import jax
import jax.numpy as jnp
import numpy as np
from jax.experimental import pallas as pl
from jax.experimental.pallas import tpu as pltpu


def adain_kernel(x_ref, w_ref, scale_ref, shift_ref, o_ref):
    """One frame-tile: relu((x @ w) * scale + shift + x).

    x_ref:     (tile_f, B, H)  matmul dtype (bf16 by default)
    w_ref:     (H, H)          BN-folded fc weight (pre-transposed), matmul dtype
    scale_ref: (B, H) f32      AdaIN scale  (latent_mu_fc output)
    shift_ref: (B, H) f32      AdaIN bias with the BN mean folded in
    o_ref:     (tile_f, B, H)
    """
    x = x_ref[...]
    # fc (+ folded BN scale): contract H of (tf, B, H) with (H, H) on the MXU,
    # accumulating in f32.
    y = jax.lax.dot_general(
        x, w_ref[...],
        dimension_numbers=(((2,), (0,)), ((), ())),
        preferred_element_type=jnp.float32)                      # (tf, B, H)

    out = (y * scale_ref[...][None, :, :]
           + shift_ref[...][None, :, :]
           + x.astype(jnp.float32))
    o_ref[...] = jnp.maximum(out, 0.0).astype(o_ref.dtype)


def _fold_params(x, latent, params, matmul_dtype, eps=1e-5):
    """Hoist loop-invariant work: latent projections + eval-mode BN folding."""
    invstd = 1.0 / jnp.sqrt(params["running_var"].astype(jnp.float32) + eps)  # (H,)
    # Fold the BN scale into the fc weight columns (pure constant fold).
    w_folded = (params["w_fc"].T.astype(jnp.float32)
                * invstd[None, :]).astype(matmul_dtype)                        # (H, H)
    # AdaIN scale / bias from the latent: tiny (B,L)@(L,H) matmuls, done once.
    scaler = (latent.astype(jnp.float32) @ params["w_mu"].T.astype(jnp.float32)
              + params["b_mu"])                                                # (B, H)
    biasv = (latent.astype(jnp.float32) @ params["w_b"].T.astype(jnp.float32)
             + params["b_b"])                                                  # (B, H)
    # Fold the BN running mean into the additive term.
    shift = biasv - (params["running_mean"] * invstd)[None, :] * scaler        # (B, H)
    return x.astype(matmul_dtype), w_folded, scaler, shift


def adain_linear_forward(x, latent, params, *, target_rows=512,
                         matmul_dtype=jnp.bfloat16, out_dtype=None):
    """x: (F, B, H), latent: (B, L) -> (F, B, H)."""
    F, B, H = x.shape
    out_dtype = x.dtype if out_dtype is None else out_dtype

    x_in, w_folded, scaler, shift = _fold_params(x, latent, params, matmul_dtype)

    # Frame-tile size: each grid step should see ~target_rows effective rows
    # (tile_f * B) -- the dominant lever for this HBM-bound kernel -- while
    # keeping >= 2 grid steps so both v7x TensorCores get work.
    tile_f = max(1, min(F, target_rows // max(B, 1)))
    if F > 1 and pl.cdiv(F, tile_f) < 2:
        tile_f = pl.cdiv(F, 2)
    grid = (pl.cdiv(F, tile_f),)   # partial tail block handled by Pallas masking

    full2d = lambda shape: pl.BlockSpec(shape, lambda i: (0, 0))

    out = pl.pallas_call(
        adain_kernel,
        out_shape=jax.ShapeDtypeStruct((F, B, H), out_dtype),
        grid=grid,
        in_specs=[
            pl.BlockSpec((tile_f, B, H), lambda i: (i, 0, 0)),  # x
            full2d((H, H)),                                     # BN-folded W_fc^T
            full2d((B, H)),                                     # scaler
            full2d((B, H)),                                     # shift
        ],
        out_specs=pl.BlockSpec((tile_f, B, H), lambda i: (i, 0, 0)),
        compiler_params=pltpu.CompilerParams(
            dimension_semantics=("parallel",)),
    )(x_in, w_folded, scaler, shift)
    return out


def adain_linear_reference_f32(x, latent, params):
    """Pure-f32 JAX reference of the module's inference-mode forward."""
    eps = 1e-5
    F, B, H = x.shape
    y = x.reshape(-1, H) @ params["w_fc"].T
    y = (y - params["running_mean"]) / jnp.sqrt(params["running_var"] + eps)
    y = y.reshape(F, B, H)
    scaler = latent @ params["w_mu"].T + params["b_mu"]   # (B, H)
    biasv = latent @ params["w_b"].T + params["b_b"]      # (B, H)
    return jnp.maximum(y * scaler[None] + biasv[None] + x, 0.0)


def adain_linear_reference_matched(x, latent, params, matmul_dtype):
    """Reference using the identical folding + dtype policy as the kernel."""
    x_in, w_folded, scaler, shift = _fold_params(x, latent, params, matmul_dtype)
    y = jnp.einsum("fbh,hk->fbk", x_in, w_folded,
                   preferred_element_type=jnp.float32)
    out = y * scaler[None] + shift[None] + x_in.astype(jnp.float32)
    return jnp.maximum(out, 0.0)


if __name__ == "__main__":
    # Small deterministic shapes consistent with the module's forward:
    #   x: (nb_frames, nb_samples, hidden), latent: (nb_samples, latent_size)
    F, B, H, L = 64, 8, 128, 16

    key = jax.random.PRNGKey(0)
    ks = jax.random.split(key, 8)

    x = jax.random.normal(ks[0], (F, B, H), dtype=jnp.float32)
    latent = jax.random.normal(ks[1], (B, L), dtype=jnp.float32)

    params = {
        # nn.Linear weights are (out_features, in_features)
        "w_fc": jax.random.normal(ks[2], (H, H), dtype=jnp.float32) * (1.0 / np.sqrt(H)),
        "w_mu": jax.random.normal(ks[3], (H, L), dtype=jnp.float32) * (1.0 / np.sqrt(L)),
        "b_mu": jax.random.normal(ks[4], (H,), dtype=jnp.float32) * 0.1,
        "w_b": jax.random.normal(ks[5], (H, L), dtype=jnp.float32) * (1.0 / np.sqrt(L)),
        "b_b": jax.random.normal(ks[6], (H,), dtype=jnp.float32) * 0.1,
        # BatchNorm1d running stats (randomized so the eval-mode normalization
        # is non-trivial; the PyTorch init would be 0 / 1).
        "running_mean": jax.random.normal(ks[7], (H,), dtype=jnp.float32) * 0.1,
        "running_var": jnp.abs(jax.random.normal(jax.random.PRNGKey(123), (H,),
                                                 dtype=jnp.float32)) + 0.5,
    }

    out = adain_linear_forward(x, latent, params)
    out = jax.block_until_ready(out)

    # Tight check vs. a reference with the exact same bf16/fold policy
    # (verifies the kernel tiling / broadcast machinery).
    ref_matched = adain_linear_reference_matched(x, latent, params, jnp.bfloat16)
    np.testing.assert_allclose(np.asarray(out, dtype=np.float32),
                               np.asarray(ref_matched, dtype=np.float32),
                               rtol=1e-3, atol=1e-3)

    # Loose check vs. the full-f32 module semantics (difference is only the
    # bf16 rounding of the fc matmul operands).
    ref_f32 = adain_linear_reference_f32(x, latent, params)
    np.testing.assert_allclose(np.asarray(out, dtype=np.float32),
                               np.asarray(ref_f32),
                               rtol=1e-1, atol=1e-1)

    print("KERNEL_OK")
</pallas_src>

<mosaic_0001>
module attributes {stable_mosaic.version = 11 : i64} {
  func.func @adain_kernel(%arg0: i32, %arg1: memref<32x8x128xbf16, #tpu.memory_space<vmem>>, %arg2: memref<128x128xbf16, #tpu.memory_space<vmem>>, %arg3: memref<8x128xf32, #tpu.memory_space<vmem>>, %arg4: memref<8x128xf32, #tpu.memory_space<vmem>>, %arg5: memref<32x8x128xf32, #tpu.memory_space<vmem>>) attributes {dimension_semantics = [#tpu.dimension_semantics<parallel>], iteration_bounds = array<i64: 2>, scalar_prefetch = 0 : i64, scratch_operands = 0 : i64, tpu.core_type = #tpu.core_type<tc>, window_params = [{transform_indices = @transform_0, window_bounds = array<i64: 32, 8, 128>}, {pipeline_mode = #tpu.pipeline_mode<synchronous>, transform_indices = @transform_1, window_bounds = array<i64: 128, 128>}, {pipeline_mode = #tpu.pipeline_mode<synchronous>, transform_indices = @transform_2, window_bounds = array<i64: 8, 128>}, {pipeline_mode = #tpu.pipeline_mode<synchronous>, transform_indices = @transform_3, window_bounds = array<i64: 8, 128>}, {transform_indices = @transform_4, window_bounds = array<i64: 32, 8, 128>}]} {
    %c0 = arith.constant 0 : index
    %c0_0 = arith.constant 0 : index
    %c0_1 = arith.constant 0 : index
    %0 = vector.load %arg1[%c0, %c0_0, %c0_1] : memref<32x8x128xbf16, #tpu.memory_space<vmem>>, vector<32x8x128xbf16>
    %c0_2 = arith.constant 0 : index
    %c0_3 = arith.constant 0 : index
    %1 = vector.load %arg2[%c0_2, %c0_3] : memref<128x128xbf16, #tpu.memory_space<vmem>>, vector<128x128xbf16>
    %cst = arith.constant dense<0.000000e+00> : vector<32x8x128xf32>
    %2 = tpu.matmul %0, %1, %cst {dimension_numbers = #tpu.dot_dimension_numbers<[2], [0], [0, 1], [1], [0, 0, 0, 1, 1, 1], [], []>} : vector<32x8x128xbf16>, vector<128x128xbf16>, vector<32x8x128xf32> -> vector<32x8x128xf32>
    %c0_4 = arith.constant 0 : index
    %c0_5 = arith.constant 0 : index
    %3 = vector.load %arg3[%c0_4, %c0_5] : memref<8x128xf32, #tpu.memory_space<vmem>>, vector<8x128xf32>
    %4 = vector.shape_cast %3 : vector<8x128xf32> to vector<1x8x128xf32>
    %5 = vector.broadcast %4 : vector<1x8x128xf32> to vector<32x8x128xf32>
    %6 = arith.mulf %2, %5 : vector<32x8x128xf32>
    %c0_6 = arith.constant 0 : index
    %c0_7 = arith.constant 0 : index
    %7 = vector.load %arg4[%c0_6, %c0_7] : memref<8x128xf32, #tpu.memory_space<vmem>>, vector<8x128xf32>
    %8 = vector.shape_cast %7 : vector<8x128xf32> to vector<1x8x128xf32>
    %9 = vector.broadcast %8 : vector<1x8x128xf32> to vector<32x8x128xf32>
    %10 = arith.addf %6, %9 : vector<32x8x128xf32>
    %11 = arith.extf %0 : vector<32x8x128xbf16> to vector<32x8x128xf32>
    %12 = arith.addf %10, %11 : vector<32x8x128xf32>
    %cst_8 = arith.constant 0.000000e+00 : f32
    %13 = vector.broadcast %cst_8 : f32 to vector<32x8x128xf32>
    %14 = arith.maximumf %12, %13 : vector<32x8x128xf32>
    %c0_9 = arith.constant 0 : index
    %c0_10 = arith.constant 0 : index
    %c0_11 = arith.constant 0 : index
    %15 = vector.load %arg5[%c0_9, %c0_10, %c0_11] : memref<32x8x128xf32, #tpu.memory_space<vmem>>, vector<32x8x128xf32>
    tpu.vector_store %arg5[%c0_9, %c0_10, %c0_11], %14 {strides = array<i32>} : memref<32x8x128xf32, #tpu.memory_space<vmem>>, vector<32x8x128xf32>,
    return
  }
  func.func @transform_0(%arg0: i32) -> (i32, i32, i32) {
    %c0_i32 = arith.constant 0 : i32
    %c0_i32_0 = arith.constant 0 : i32
    %c0_i32_1 = arith.constant 0 : i32
    return %arg0, %c0_i32, %c0_i32_0 : i32, i32, i32
  }
  func.func @transform_1(%arg0: i32) -> (i32, i32) {
    %c0_i32 = arith.constant 0 : i32
    %c0_i32_0 = arith.constant 0 : i32
    %c0_i32_1 = arith.constant 0 : i32
    return %c0_i32, %c0_i32_0 : i32, i32
  }
  func.func @transform_2(%arg0: i32) -> (i32, i32) {
    %c0_i32 = arith.constant 0 : i32
    %c0_i32_0 = arith.constant 0 : i32
    %c0_i32_1 = arith.constant 0 : i32
    return %c0_i32, %c0_i32_0 : i32, i32
  }
  func.func @transform_3(%arg0: i32) -> (i32, i32) {
    %c0_i32 = arith.constant 0 : i32
    %c0_i32_0 = arith.constant 0 : i32
    %c0_i32_1 = arith.constant 0 : i32
    return %c0_i32, %c0_i32_0 : i32, i32
  }
  func.func @transform_4(%arg0: i32) -> (i32, i32, i32) {
    %c0_i32 = arith.constant 0 : i32
    %c0_i32_0 = arith.constant 0 : i32
    %c0_i32_1 = arith.constant 0 : i32
    return %arg0, %c0_i32, %c0_i32_0 : i32, i32, i32
  }
}

</mosaic_0001>

<llo_original>
// kernel: tpu_custom_call.1
$region0: #{tpu_custom_call.1}
  #allocation0 [shape = 'u32[]', space=smem, size = 0x4, offset = 0x4, fixed_abs, tag = 'smem constant byte address 0x4 - core index']
  #allocation1 [shape = 'u32[144,128]{1,0:T(1,128)}', space=vmem, size = 0x12000, scoped, tag = 'internal scratch']
  %s0 = inlined_call_operand.hbm [shape: bf16[64,8,128], index: 0, kind: input, shape index: {}]
  %s1 = inlined_call_operand.hbm [shape: bf16[128,128], index: 1, kind: input, shape index: {}]
  %s2 = inlined_call_operand.hbm [shape: f32[8,128], index: 2, kind: input, shape index: {}]
  %s3 = inlined_call_operand.hbm [shape: f32[8,128], index: 3, kind: input, shape index: {}]
  %s4 = inlined_call_operand.hbm [shape: f32[64,8,128], index: 4, kind: output, shape index: {}]
  %s5 = sld [smem:[#allocation0]]
  $region65: #{tpu_custom_call.1} parent=0
    _
  %s7 = ssub.s32 1, %s5
  %s8 = scalar_select 0, %s7, %s5
  $region1: #{tpu_custom_call.1} parent=0
    #allocation2 [shape = 'u8[131072]{0}', space=vmem, size = 0x20000, scoped, tag = 'input window, operand 0']
    #allocation3 [shape = 's32[2]{0}', space=sflag, size = 0x8, scoped, tag = 'scoped memory for tpu_custom_call.1']
    #allocation4 [shape = 's32[2]{0}', space=sflag, size = 0x8, scoped, tag = 'scoped memory for tpu_custom_call.1']
    #allocation5 [shape = 'u8[32768]{0}', space=vmem, size = 0x8000, scoped, tag = 'input window, operand 1, single buffered']
    #allocation6 [shape = 's32[1]{0}', space=sflag, size = 0x4, scoped, tag = 'scoped memory for tpu_custom_call.1']
    #allocation7 [shape = 'u8[4096]{0}', space=vmem, size = 0x1000, scoped, tag = 'input window, operand 2, single buffered']
    #allocation8 [shape = 'u8[4096]{0}', space=vmem, size = 0x1000, scoped, tag = 'input window, operand 3, single buffered']
    #allocation9 [shape = 's32[1]{0}', space=sflag, size = 0x4, scoped, tag = 'scoped memory for tpu_custom_call.1']
    #allocation10 [shape = 'u8[262144]{0}', space=vmem, size = 0x40000, scoped, tag = 'output window, operand 0']
    %9 = vsyncpa [#allocation3], 0
    %s10 = scalar_lea.sflag [#allocation3], 1
    %11 = vsyncpa %s10, 0
    %12 = vsyncpa [#allocation6], 0
    %13 = vsyncpa [#allocation9], 0
    %14 = vsyncpa [#allocation4], 0
    %s15 = scalar_lea.sflag [#allocation4], 1
    %16 = vsyncpa %s15, 0
    loop: start=0, step=1, limit=4
    $region2: #{tpu_custom_call.1} parent=1 // loop_pre_header
      _
    $region3: #{tpu_custom_call.1} parent=1 // loop_header
      %s18 = sphi 0, %s22
      %p19 = scmp.ge.s32.totalorder %s18, 4
      %s28 = sphi 0, %s30
      %s31 = sphi 0, %s28
      %s32 = sphi 0, %s31
      %s48 = sphi 0, %s32
      %s52 = sphi 0, %s52
      %s54 = sphi 0, %s52
      %s55 = sphi 0, %s54
      %s69 = sphi 0, %s55
      %s73 = sphi 0, %s73
      %s75 = sphi 0, %s73
      %s76 = sphi 0, %s75
      %s90 = sphi 0, %s76
      %s94 = sphi 0, %s94
      %s96 = sphi 0, %s94
      %s97 = sphi 0, %s96
      %s111 = sphi 0, %s97
      %s117 = sphi 0, %s119
      %s120 = sphi 0, %s117
      %s121 = sphi 0, %s120
      %s137 = sphi 0, %s121
    $region4: #{tpu_custom_call.1} parent=1 // loop_header_branch
      %21 = sbr.rel (%p19) target = $region8
    $region5: #{tpu_custom_call.1} parent=1 // loop_body
      %s23 = ssub.s32 %s18, 1
      %s24 = ssub.s32 %s18, 2
      %s25 = sadd.s32 %s18, 1
      %s26 = ssub.s32 %s18, %s25
      %p27 = scmp.eq.s32.totalorder %s26, 0
      %s29 = sadd.s32 %s28, 1
      %s30 = scalar_select %p27, %s28, %s29
      %p33 = pneg %p27
      %p34 = scmp.eq.s32.totalorder %s18, 1
      %p35 = por %p33, %p34
      %p36 = scmp.ne.s32.totalorder %s28, %s31
      %p37 = scmp.eq.s32.totalorder %s18, 0
      %p38 = por %p36, %p37
      %p39 = scmp.ne.s32.totalorder %s28, %s31
      %p40 = scmp.eq.s32.totalorder %s23, 1
      %p41 = por %p39, %p40
      %p42 = scmp.ne.s32.totalorder %s31, %s32
      %p43 = scmp.eq.s32.totalorder %s23, 0
      %p44 = por %p42, %p43
      %p45 = scmp.ne.s32.totalorder %s31, %s32
      %p46 = scmp.eq.s32.totalorder %s24, 1
      %p47 = por %p45, %p46
      %p49 = scmp.ne.s32.totalorder %s32, %s48
      %p50 = scmp.eq.s32.totalorder %s24, 0
      %p51 = por %p49, %p50
      %s53 = sadd.s32 %s52, 1
      %p56 = scmp.eq.s32.totalorder %s18, 1
      %p57 = scmp.ne.s32.totalorder %s52, %s54
      %p58 = scmp.eq.s32.totalorder %s18, 0
      %p59 = por %p57, %p58
      %p60 = scmp.ne.s32.totalorder %s52, %s54
      %p61 = scmp.eq.s32.totalorder %s23, 1
      %p62 = por %p60, %p61
      %p63 = scmp.ne.s32.totalorder %s54, %s55
      %p64 = scmp.eq.s32.totalorder %s23, 0
      %p65 = por %p63, %p64
      %p66 = scmp.ne.s32.totalorder %s54, %s55
      %p67 = scmp.eq.s32.totalorder %s24, 1
      %p68 = por %p66, %p67
      %p70 = scmp.ne.s32.totalorder %s55, %s69
      %p71 = scmp.eq.s32.totalorder %s24, 0
      %p72 = por %p70, %p71
      %s74 = sadd.s32 %s73, 1
      %p77 = scmp.eq.s32.totalorder %s18, 1
      %p78 = scmp.ne.s32.totalorder %s73, %s75
      %p79 = scmp.eq.s32.totalorder %s18, 0
      %p80 = por %p78, %p79
      %p81 = scmp.ne.s32.totalorder %s73, %s75
      %p82 = scmp.eq.s32.totalorder %s23, 1
      %p83 = por %p81, %p82
      %p84 = scmp.ne.s32.totalorder %s75, %s76
      %p85 = scmp.eq.s32.totalorder %s23, 0
      %p86 = por %p84, %p85
      %p87 = scmp.ne.s32.totalorder %s75, %s76
      %p88 = scmp.eq.s32.totalorder %s24, 1
      %p89 = por %p87, %p88
      %p91 = scmp.ne.s32.totalorder %s76, %s90
      %p92 = scmp.eq.s32.totalorder %s24, 0
      %p93 = por %p91, %p92
      %s95 = sadd.s32 %s94, 1
      %p98 = scmp.eq.s32.totalorder %s18, 1
      %p99 = scmp.ne.s32.totalorder %s94, %s96
      %p100 = scmp.eq.s32.totalorder %s18, 0
      %p101 = por %p99, %p100
      %p102 = scmp.ne.s32.totalorder %s94, %s96
      %p103 = scmp.eq.s32.totalorder %s23, 1
      %p104 = por %p102, %p103
      %p105 = scmp.ne.s32.totalorder %s96, %s97
      %p106 = scmp.eq.s32.totalorder %s23, 0
      %p107 = por %p105, %p106
      %p108 = scmp.ne.s32.totalorder %s96, %s97
      %p109 = scmp.eq.s32.totalorder %s24, 1
      %p110 = por %p108, %p109
      %p112 = scmp.ne.s32.totalorder %s97, %s111
      %p113 = scmp.eq.s32.totalorder %s24, 0
      %p114 = por %p112, %p113
      %s115 = ssub.s32 %s18, %s25
      %p116 = scmp.eq.s32.totalorder %s115, 0
      %s118 = sadd.s32 %s117, 1
      %s119 = scalar_select %p116, %s117, %s118
      %p122 = pneg %p116
      %p123 = scmp.eq.s32.totalorder %s18, 1
      %p124 = por %p122, %p123
      %p125 = scmp.ne.s32.totalorder %s117, %s120
      %p126 = scmp.eq.s32.totalorder %s18, 0
      %p127 = por %p125, %p126
      %p128 = scmp.ne.s32.totalorder %s117, %s120
      %p129 = scmp.eq.s32.totalorder %s23, 1
      %p130 = por %p128, %p129
      %p131 = scmp.ne.s32.totalorder %s120, %s121
      %p132 = scmp.eq.s32.totalorder %s23, 0
      %p133 = por %p131, %p132
      %p134 = scmp.ne.s32.totalorder %s120, %s121
      %p135 = scmp.eq.s32.totalorder %s24, 1
      %p136 = por %p134, %p135
      %p138 = scmp.ne.s32.totalorder %s121, %s137
      %p139 = scmp.eq.s32.totalorder %s24, 0
      %p140 = por %p138, %p139
      %p141 = scmp.le.s32.totalorder 1, %s18
      %p142 = scmp.lt.s32.totalorder %s18, 3
      %p143 = pnand %p141, %p142
      %p144 = pneg %p143
      // Predicated region
      $region9: #{tpu_custom_call.1} parent=5 // pred_check
        _
      $region10: #{tpu_custom_call.1} parent=5 // pred_check_branch
        %146 = sbr.rel (%p143) target = $region12
      $region11: #{tpu_custom_call.1} parent=5 // pred_region
        %s147 = ssub.s32 %s18, 1
        // Predicated region
        $region13: #{tpu_custom_call.1} parent=11 // pred_check
          %p148 = pneg %p65
        $region14: #{tpu_custom_call.1} parent=11 // pred_check_branch
          %150 = sbr.rel (%p148) target = $region16
        $region15: #{tpu_custom_call.1} parent=11 // pred_region
          %s152 = ssub.s32 1024, 1024
          %153 = vsyncadd [#allocation6], %s152
          %s154 = sshll.u32 [#allocation5], 4
          %s155 = int_to_ptr.vmem [resolvable:$true] %s154
          %160 = dma.hbm_to_vmem [thread:$0]  %s1, 1024, %s155, [#allocation6], 64, 64, 4
        $region16: #{tpu_custom_call.1} parent=11 // pred_fallthru
          _
        // Predicated region
        $region17: #{tpu_custom_call.1} parent=11 // pred_check
          %p161 = pneg %p86
        $region18: #{tpu_custom_call.1} parent=11 // pred_check_branch
          %163 = sbr.rel (%p161) target = $region20
        $region19: #{tpu_custom_call.1} parent=11 // pred_region
          %s165 = ssub.s32 128, 128
          %166 = vsyncadd [#allocation6], %s165
          %s168 = sshll.u32 [#allocation7], 4
          %s169 = int_to_ptr.vmem [resolvable:$true] %s168
          %171 = dma.hbm_to_vmem [thread:$0]  %s2, 128, %s169, [#allocation6]
        $region20: #{tpu_custom_call.1} parent=11 // pred_fallthru
          _
        // Predicated region
        $region21: #{tpu_custom_call.1} parent=11 // pred_check
          %p172 = pneg %p107
        $region22: #{tpu_custom_call.1} parent=11 // pred_check_branch
          %174 = sbr.rel (%p172) target = $region24
        $region23: #{tpu_custom_call.1} parent=11 // pred_region
          %s176 = ssub.s32 128, 128
          %177 = vsyncadd [#allocation9], %s176
          %s179 = sshll.u32 [#allocation8], 4
          %s180 = int_to_ptr.vmem [resolvable:$true] %s179
          %182 = dma.hbm_to_vmem [thread:$0]  %s3, 128, %s180, [#allocation9]
        $region24: #{tpu_custom_call.1} parent=11 // pred_fallthru
          _
      $region12: #{tpu_custom_call.1} parent=5 // pred_fallthru
        _
      %p183 = scmp.lt.s32.totalorder %s18, 2
      // Predicated region
      $region25: #{tpu_custom_call.1} parent=5 // pred_check
        %p184 = pneg %p183
      $region26: #{tpu_custom_call.1} parent=5 // pred_check_branch
        %186 = sbr.rel (%p184) target = $region28
      $region27: #{tpu_custom_call.1} parent=5 // pred_region
        // Predicated region
        $region29: #{tpu_custom_call.1} parent=27 // pred_check
          %p187 = pneg %p38
        $region30: #{tpu_custom_call.1} parent=27 // pred_check_branch
          %189 = sbr.rel (%p187) target = $region32
        $region31: #{tpu_custom_call.1} parent=27 // pred_region
          %s190 = sand.u32 %s28, 1
          %s191 = scalar_lea.sflag [#allocation3], %s190
          %s192 = sand.u32 %s28, 1
          %s193 = smul.addr %s192, 128
          %s194 = scalar_lea.vmem [#allocation2], %s193
          %s195 = smul.u32 32, %s18
          %s197 = ssub.s32 2048, 2048
          %198 = vsyncadd %s191, %s197
          %s199 = smul.addr %s195, 64
          %s200 = scalar_lea.hbm %s0, %s199
          %s201 = sshll.u32 %s194, 4
          %s202 = int_to_ptr.vmem [resolvable:$true] %s201
          %207 = dma.hbm_to_vmem [thread:$0]  %s200, 2048, %s202, %s191, 64, 64, 4
        $region32: #{tpu_custom_call.1} parent=27 // pred_fallthru
          _
      $region28: #{tpu_custom_call.1} parent=5 // pred_fallthru
        _
      %p208 = scmp.le.s32.totalorder 1, %s18
      %p209 = scmp.lt.s32.totalorder %s18, 3
      %p210 = pnand %p208, %p209
      %p211 = pneg %p210
      // Predicated region
      $region33: #{tpu_custom_call.1} parent=5 // pred_check
        _
      $region34: #{tpu_custom_call.1} parent=5 // pred_check_branch
        %213 = sbr.rel (%p210) target = $region36
      $region35: #{tpu_custom_call.1} parent=5 // pred_region
        %s214 = ssub.s32 %s18, 1
        %s215 = sand.u32 %s31, 1
        %s216 = scalar_lea.sflag [#allocation3], %s215
        %s217 = sand.u32 %s31, 1
        %s218 = smul.addr %s217, 128
        %s219 = scalar_lea.vmem [#allocation2], %s218
        // Predicated region
        $region37: #{tpu_custom_call.1} parent=35 // pred_check
          %p220 = pneg %p44
        $region38: #{tpu_custom_call.1} parent=35 // pred_check_branch
          %222 = sbr.rel (%p220) target = $region40
        $region39: #{tpu_custom_call.1} parent=35 // pred_region
          %223 = dma.done %s216, 2048
        $region40: #{tpu_custom_call.1} parent=35 // pred_fallthru
          _
        // Predicated region
        $region41: #{tpu_custom_call.1} parent=35 // pred_check
          %p224 = pneg %p65
        $region42: #{tpu_custom_call.1} parent=35 // pred_check_branch
          %226 = sbr.rel (%p224) target = $region44
        $region43: #{tpu_custom_call.1} parent=35 // pred_region
          %227 = dma.done [#allocation6], 1024
        $region44: #{tpu_custom_call.1} parent=35 // pred_fallthru
          _
        // Predicated region
        $region45: #{tpu_custom_call.1} parent=35 // pred_check
          %p228 = pneg %p86
        $region46: #{tpu_custom_call.1} parent=35 // pred_check_branch
          %230 = sbr.rel (%p228) target = $region48
        $region47: #{tpu_custom_call.1} parent=35 // pred_region
          %231 = dma.done [#allocation6], 128
        $region48: #{tpu_custom_call.1} parent=35 // pred_fallthru
          _
        // Predicated region
        $region49: #{tpu_custom_call.1} parent=35 // pred_check
          %p232 = pneg %p107
        $region50: #{tpu_custom_call.1} parent=35 // pred_check_branch
          %234 = sbr.rel (%p232) target = $region52
        $region51: #{tpu_custom_call.1} parent=35 // pred_region
          %235 = dma.done [#allocation9], 128
        $region52: #{tpu_custom_call.1} parent=35 // pred_fallthru
          _
        %s236 = sand.u32 %s31, 1
        %s237 = scalar_lea.sflag [#allocation3], %s236
        %s238 = sand.u32 %s31, 1
        %s239 = smul.addr %s238, 128
        %s240 = scalar_lea.vmem [#allocation2], %s239
        %p241 = pneg %p44
        %p242 = pneg %p41
        %p243 = pneg %p65
        %p244 = pneg %p62
        %p245 = pneg %p86
        %p246 = pneg %p83
        %p247 = pneg %p107
        %p248 = pneg %p104
        %p249 = pneg %p133
        %p250 = pneg %p130
        %s251 = sand.u32 %s120, 1
        %s252 = scalar_lea.sflag [#allocation4], %s251
        %s253 = sand.u32 %s120, 1
        %s254 = smul.addr %s253, 256
        %s255 = scalar_lea.vmem [#allocation10], %s254
        %s256 = smul.u32 32, %s23
        %s257 = smul.u32 32, %s23
        %v259 = vld [vmem:[%s219] sm:$0xf]
        %v260 = vld [vmem:[%s219 + $0x4] sm:$0xf]
        %v261 = vld [vmem:[%s219 + $0x8] sm:$0xf]
        %v262 = vld [vmem:[%s219 + $0xc] sm:$0xf]
        %v263 = vld [vmem:[%s219 + $0x10] sm:$0xf]
        %v264 = vld [vmem:[%s219 + $0x14] sm:$0xf]
        %v265 = vld [vmem:[%s219 + $0x18] sm:$0xf]
        %v266 = vld [vmem:[%s219 + $0x1c] sm:$0xf]
        %v267 = vld [vmem:[%s219 + $0x20] sm:$0xf]
        %v268 = vld [vmem:[%s219 + $0x24] sm:$0xf]
        %v269 = vld [vmem:[%s219 + $0x28] sm:$0xf]
        %v270 = vld [vmem:[%s219 + $0x2c] sm:$0xf]
        %v271 = vld [vmem:[%s219 + $0x30] sm:$0xf]
        %v272 = vld [vmem:[%s219 + $0x34] sm:$0xf]
        %v273 = vld [vmem:[%s219 + $0x38] sm:$0xf]
        %v274 = vld [vmem:[%s219 + $0x3c] sm:$0xf]
        %v275 = vld [vmem:[%s219 + $0x40] sm:$0xf]
        %v276 = vld [vmem:[%s219 + $0x44] sm:$0xf]
        %v277 = vld [vmem:[%s219 + $0x48] sm:$0xf]
        %v278 = vld [vmem:[%s219 + $0x4c] sm:$0xf]
        %v279 = vld [vmem:[%s219 + $0x50] sm:$0xf]
        %v280 = vld [vmem:[%s219 + $0x54] sm:$0xf]
        %v281 = vld [vmem:[%s219 + $0x58] sm:$0xf]
        %v282 = vld [vmem:[%s219 + $0x5c] sm:$0xf]
        %v283 = vld [vmem:[%s219 + $0x60] sm:$0xf]
        %v284 = vld [vmem:[%s219 + $0x64] sm:$0xf]
        %v285 = vld [vmem:[%s219 + $0x68] sm:$0xf]
        %v286 = vld [vmem:[%s219 + $0x6c] sm:$0xf]
        %v287 = vld [vmem:[%s219 + $0x70] sm:$0xf]
        %v288 = vld [vmem:[%s219 + $0x74] sm:$0xf]
        %v289 = vld [vmem:[%s219 + $0x78] sm:$0xf]
        %v290 = vld [vmem:[%s219 + $0x7c] sm:$0xf]
        %v291 = vld [vmem:[#allocation5] sm:$0xf]
        %v292 = vld [vmem:[#allocation5 + $0x4] sm:$0xf]
        %v293 = vld [vmem:[#allocation5 + $0x8] sm:$0xf]
        %v294 = vld [vmem:[#allocation5 + $0xc] sm:$0xf]
        %v295 = vld [vmem:[#allocation5 + $0x10] sm:$0xf]
        %v296 = vld [vmem:[#allocation5 + $0x14] sm:$0xf]
        %v297 = vld [vmem:[#allocation5 + $0x18] sm:$0xf]
        %v298 = vld [vmem:[#allocation5 + $0x1c] sm:$0xf]
        %v299 = vld [vmem:[#allocation5 + $0x20] sm:$0xf]
        %v300 = vld [vmem:[#allocation5 + $0x24] sm:$0xf]
        %v301 = vld [vmem:[#allocation5 + $0x28] sm:$0xf]
        %v302 = vld [vmem:[#allocation5 + $0x2c] sm:$0xf]
        %v303 = vld [vmem:[#allocation5 + $0x30] sm:$0xf]
        %v304 = vld [vmem:[#allocation5 + $0x34] sm:$0xf]
        %v305 = vld [vmem:[#allocation5 + $0x38] sm:$0xf]
        %v306 = vld [vmem:[#allocation5 + $0x3c] sm:$0xf]
        %v339 = vunpack.c.l.b16 %v259
        %v340 = vunpack.c.l.b16 %v260
        %v341 = vunpack.c.l.b16 %v261
        %v342 = vunpack.c.l.b16 %v262
        %v343 = vunpack.c.l.b16 %v263
        %v344 = vunpack.c.l.b16 %v264
        %v345 = vunpack.c.l.b16 %v265
        %v346 = vunpack.c.l.b16 %v266
        %v347 = vunpack.c.l.b16 %v267
        %v348 = vunpack.c.l.b16 %v268
        %v349 = vunpack.c.l.b16 %v269
        %v350 = vunpack.c.l.b16 %v270
        %v351 = vunpack.c.l.b16 %v271
        %v352 = vunpack.c.l.b16 %v272
        %v353 = vunpack.c.l.b16 %v273
        %v354 = vunpack.c.l.b16 %v274
        %v355 = vunpack.c.l.b16 %v275
        %v356 = vunpack.c.l.b16 %v276
        %v357 = vunpack.c.l.b16 %v277
        %v358 = vunpack.c.l.b16 %v278
        %v359 = vunpack.c.l.b16 %v279
        %v360 = vunpack.c.l.b16 %v280
        %v361 = vunpack.c.l.b16 %v281
        %v362 = vunpack.c.l.b16 %v282
        %v363 = vunpack.c.l.b16 %v283
        %v364 = vunpack.c.l.b16 %v284
        %v365 = vunpack.c.l.b16 %v285
        %v366 = vunpack.c.l.b16 %v286
        %v367 = vunpack.c.l.b16 %v287
        %v368 = vunpack.c.l.b16 %v288
        %v369 = vunpack.c.l.b16 %v289
        %v370 = vunpack.c.l.b16 %v290
        %v371 = vpack.c.b16 %v340, %v339
        %v372 = vpack.c.b16 %v342, %v341
        %v373 = vpack.c.b16 %v344, %v343
        %v374 = vpack.c.b16 %v346, %v345
        %v375 = vpack.c.b16 %v348, %v347
        %v376 = vpack.c.b16 %v350, %v349
        %v377 = vpack.c.b16 %v352, %v351
        %v378 = vpack.c.b16 %v354, %v353
        %v379 = vpack.c.b16 %v356, %v355
        %v380 = vpack.c.b16 %v358, %v357
        %v381 = vpack.c.b16 %v360, %v359
        %v382 = vpack.c.b16 %v362, %v361
        %v383 = vpack.c.b16 %v364, %v363
        %v384 = vpack.c.b16 %v366, %v365
        %v385 = vpack.c.b16 %v368, %v367
        %v386 = vpack.c.b16 %v370, %v369
        %v419 = vunpack.c.l.b16 %v291
        %v420 = vunpack.c.l.b16 %v292
        %v421 = vunpack.c.l.b16 %v293
        %v422 = vunpack.c.l.b16 %v294
        %v423 = vunpack.c.l.b16 %v295
        %v424 = vunpack.c.l.b16 %v296
        %v425 = vunpack.c.l.b16 %v297
        %v426 = vunpack.c.l.b16 %v298
        %v427 = vunpack.c.l.b16 %v299
        %v428 = vunpack.c.l.b16 %v300
        %v429 = vunpack.c.l.b16 %v301
        %v430 = vunpack.c.l.b16 %v302
        %v431 = vunpack.c.l.b16 %v303
        %v432 = vunpack.c.l.b16 %v304
        %v433 = vunpack.c.l.b16 %v305
        %v434 = vunpack.c.l.b16 %v306
        %v435 = vpack.c.b16 %v420, %v419
        %v436 = vpack.c.b16 %v422, %v421
        %v437 = vpack.c.b16 %v424, %v423
        %v438 = vpack.c.b16 %v426, %v425
        %v439 = vpack.c.b16 %v428, %v427
        %v440 = vpack.c.b16 %v430, %v429
        %v441 = vpack.c.b16 %v432, %v431
        %v442 = vpack.c.b16 %v434, %v433
        %451 = vmatprep.subr.bf16.mxu0 0
        %452 = vmatpush1.bf16.msra.mxu0 %v442
        %453 = vmatprep.subr.bf16.mxu0 0
        %454 = vmatpush1.bf16.msra.mxu0 %v441
        %455 = vmatprep.subr.bf16.mxu0 0
        %456 = vmatpush1.bf16.msra.mxu0 %v440
        %457 = vmatprep.subr.bf16.mxu0 0
        %458 = vmatpush1.bf16.msra.mxu0 %v439
        %459 = vmatprep.subr.bf16.mxu0 0
        %460 = vmatpush1.bf16.msra.mxu0 %v438
        %461 = vmatprep.subr.bf16.mxu0 0
        %462 = vmatpush1.bf16.msra.mxu0 %v437
        %463 = vmatprep.subr.bf16.mxu0 0
        %464 = vmatpush1.bf16.msra.mxu0 %v436
        %465 = vmatprep.subr.bf16.mxu0 0
        %466 = vmatpush1.bf16.msra.mxu0 %v435
        %467 = vmatprep.subr.bf16.mxu0 0
        %468 = vmatpush2.bf16.msra.mxu0 0
        %469 = vmatprep.subr.bf16.mxu0 0
        %470 = vmatpush2.bf16.msra.mxu0 0
        %471 = vmatprep.subr.bf16.mxu0 0
        %472 = vmatpush2.bf16.msra.mxu0 0
        %473 = vmatprep.subr.bf16.mxu0 0
        %474 = vmatpush2.bf16.msra.mxu0 0
        %475 = vmatprep.subr.bf16.mxu0 0
        %476 = vmatpush2.bf16.msra.mxu0 0
        %477 = vmatprep.subr.bf16.mxu0 0
        %478 = vmatpush2.bf16.msra.mxu0 0
        %479 = vmatprep.subr.bf16.mxu0 0
        %480 = vmatpush2.bf16.msra.mxu0 0
        %481 = vmatprep.subr.bf16.mxu0 0
        %482 = vmatpush2.bf16.msra.mxu0 0
        %483 = vmatprep.mubr.bf16.mxu0 0
        %484 = vmatmul.mubr.bf16.gmra.mxu0 %v371
        %v485 = vpop.f32.mrf.mxu0
        %v486 = vadd.f32 0.0, %v485
        %v487 = vpop.f32.mrf.mxu0
        %v488 = vpop.f32.mrf.mxu0
        %v489 = vadd.f32 0.0, %v488
        %v490 = vpop.f32.mrf.mxu0
        %491 = vmatprep.mubr.bf16.mxu0 0
        %492 = vmatmul.mubr.bf16.gmra.mxu0 %v372
        %v493 = vpop.f32.mrf.mxu0
        %v494 = vadd.f32 0.0, %v493
        %v495 = vpop.f32.mrf.mxu0
        %v496 = vpop.f32.mrf.mxu0
        %v497 = vadd.f32 0.0, %v496
        %v498 = vpop.f32.mrf.mxu0
        %499 = vmatprep.mubr.bf16.mxu0 0
        %500 = vmatmul.mubr.bf16.gmra.mxu0 %v373
        %v501 = vpop.f32.mrf.mxu0
        %v502 = vadd.f32 0.0, %v501
        %v503 = vpop.f32.mrf.mxu0
        %v504 = vpop.f32.mrf.mxu0
        %v505 = vadd.f32 0.0, %v504
        %v506 = vpop.f32.mrf.mxu0
        %507 = vmatprep.mubr.bf16.mxu0 0
        %508 = vmatmul.mubr.bf16.gmra.mxu0 %v374
        %v509 = vpop.f32.mrf.mxu0
        %v510 = vadd.f32 0.0, %v509
        %v511 = vpop.f32.mrf.mxu0
        %v512 = vpop.f32.mrf.mxu0
        %v513 = vadd.f32 0.0, %v512
        %v514 = vpop.f32.mrf.mxu0
        %515 = vmatprep.mubr.bf16.mxu0 0
        %516 = vmatmul.mubr.bf16.gmra.mxu0 %v375
        %v517 = vpop.f32.mrf.mxu0
        %v518 = vadd.f32 0.0, %v517
        %v519 = vpop.f32.mrf.mxu0
        %v520 = vpop.f32.mrf.mxu0
        %v521 = vadd.f32 0.0, %v520
        %v522 = vpop.f32.mrf.mxu0
        %523 = vmatprep.mubr.bf16.mxu0 0
        %524 = vmatmul.mubr.bf16.gmra.mxu0 %v376
        %v525 = vpop.f32.mrf.mxu0
        %v526 = vadd.f32 0.0, %v525
        %v527 = vpop.f32.mrf.mxu0
        %v528 = vpop.f32.mrf.mxu0
        %v529 = vadd.f32 0.0, %v528
        %v530 = vpop.f32.mrf.mxu0
        %531 = vmatprep.mubr.bf16.mxu0 0
        %532 = vmatmul.mubr.bf16.gmra.mxu0 %v377
        %v533 = vpop.f32.mrf.mxu0
        %v534 = vadd.f32 0.0, %v533
        %v535 = vpop.f32.mrf.mxu0
        %v536 = vpop.f32.mrf.mxu0
        %v537 = vadd.f32 0.0, %v536
        %v538 = vpop.f32.mrf.mxu0
        %539 = vmatprep.mubr.bf16.mxu0 0
        %540 = vmatmul.mubr.bf16.gmra.mxu0 %v378
        %v541 = vpop.f32.mrf.mxu0
        %v542 = vadd.f32 0.0, %v541
        %v543 = vpop.f32.mrf.mxu0
        %v544 = vpop.f32.mrf.mxu0
        %v545 = vadd.f32 0.0, %v544
        %v546 = vpop.f32.mrf.mxu0
        %547 = vmatprep.mubr.bf16.mxu0 0
        %548 = vmatmul.mubr.bf16.gmra.mxu0 %v379
        %v549 = vpop.f32.mrf.mxu0
        %v550 = vadd.f32 0.0, %v549
        %v551 = vpop.f32.mrf.mxu0
        %v552 = vpop.f32.mrf.mxu0
        %v553 = vadd.f32 0.0, %v552
        %v554 = vpop.f32.mrf.mxu0
        %555 = vmatprep.mubr.bf16.mxu0 0
        %556 = vmatmul.mubr.bf16.gmra.mxu0 %v380
        %v557 = vpop.f32.mrf.mxu0
        %v558 = vadd.f32 0.0, %v557
        %v559 = vpop.f32.mrf.mxu0
        %v560 = vpop.f32.mrf.mxu0
        %v561 = vadd.f32 0.0, %v560
        %v562 = vpop.f32.mrf.mxu0
        %563 = vmatprep.mubr.bf16.mxu0 0
        %564 = vmatmul.mubr.bf16.gmra.mxu0 %v381
        %v565 = vpop.f32.mrf.mxu0
        %v566 = vadd.f32 0.0, %v565
        %v567 = vpop.f32.mrf.mxu0
        %v568 = vpop.f32.mrf.mxu0
        %v569 = vadd.f32 0.0, %v568
        %v570 = vpop.f32.mrf.mxu0
        %571 = vmatprep.mubr.bf16.mxu0 0
        %572 = vmatmul.mubr.bf16.gmra.mxu0 %v382
        %v573 = vpop.f32.mrf.mxu0
        %v574 = vadd.f32 0.0, %v573
        %v575 = vpop.f32.mrf.mxu0
        %v576 = vpop.f32.mrf.mxu0
        %v577 = vadd.f32 0.0, %v576
        %v578 = vpop.f32.mrf.mxu0
        %579 = vmatprep.mubr.bf16.mxu0 0
        %580 = vmatmul.mubr.bf16.gmra.mxu0 %v383
        %v581 = vpop.f32.mrf.mxu0
        %v582 = vadd.f32 0.0, %v581
        %v583 = vpop.f32.mrf.mxu0
        %v584 = vpop.f32.mrf.mxu0
        %v585 = vadd.f32 0.0, %v584
        %v586 = vpop.f32.mrf.mxu0
        %587 = vmatprep.mubr.bf16.mxu0 0
        %588 = vmatmul.mubr.bf16.gmra.mxu0 %v384
        %v589 = vpop.f32.mrf.mxu0
        %v590 = vadd.f32 0.0, %v589
        %v591 = vpop.f32.mrf.mxu0
        %v592 = vpop.f32.mrf.mxu0
        %v593 = vadd.f32 0.0, %v592
        %v594 = vpop.f32.mrf.mxu0
        %595 = vmatprep.mubr.bf16.mxu0 0
        %596 = vmatmul.mubr.bf16.gmra.mxu0 %v385
        %v597 = vpop.f32.mrf.mxu0
        %v598 = vadd.f32 0.0, %v597
        %v599 = vpop.f32.mrf.mxu0
        %v600 = vpop.f32.mrf.mxu0
        %v601 = vadd.f32 0.0, %v600
        %v602 = vpop.f32.mrf.mxu0
        %603 = vmatprep.mubr.bf16.mxu0 0
        %604 = vmatmul.mubr.bf16.gmra.mxu0 %v386
        %v605 = vpop.f32.mrf.mxu0
        %v606 = vadd.f32 0.0, %v605
        %v607 = vpop.f32.mrf.mxu0
        %v608 = vpop.f32.mrf.mxu0
        %v609 = vadd.f32 0.0, %v608
        %v610 = vpop.f32.mrf.mxu0
        %611 = vdwg.mxu0
        %v612 = vld [vmem:[#allocation7] sm:$0xff]
        %v613 = vmul.f32 %v486, %v612
        %v614 = vmul.f32 %v489, %v612
        %v615 = vmul.f32 %v494, %v612
        %v616 = vmul.f32 %v497, %v612
        %v617 = vmul.f32 %v502, %v612
        %v618 = vmul.f32 %v505, %v612
        %v619 = vmul.f32 %v510, %v612
        %v620 = vmul.f32 %v513, %v612
        %v621 = vmul.f32 %v518, %v612
        %v622 = vmul.f32 %v521, %v612
        %v623 = vmul.f32 %v526, %v612
        %v624 = vmul.f32 %v529, %v612
        %v625 = vmul.f32 %v534, %v612
        %v626 = vmul.f32 %v537, %v612
        %v627 = vmul.f32 %v542, %v612
        %v628 = vmul.f32 %v545, %v612
        %v629 = vmul.f32 %v550, %v612
        %v630 = vmul.f32 %v553, %v612
        %v631 = vmul.f32 %v558, %v612
        %v632 = vmul.f32 %v561, %v612
        %v633 = vmul.f32 %v566, %v612
        %v634 = vmul.f32 %v569, %v612
        %v635 = vmul.f32 %v574, %v612
        %v636 = vmul.f32 %v577, %v612
        %v637 = vmul.f32 %v582, %v612
        %v638 = vmul.f32 %v585, %v612
        %v639 = vmul.f32 %v590, %v612
        %v640 = vmul.f32 %v593, %v612
        %v641 = vmul.f32 %v598, %v612
        %v642 = vmul.f32 %v601, %v612
        %v643 = vmul.f32 %v606, %v612
        %v644 = vmul.f32 %v609, %v612
        %v645 = vld [vmem:[#allocation8] sm:$0xff]
        %v646 = vadd.f32 %v613, %v645
        %v647 = vadd.f32 %v614, %v645
        %v648 = vadd.f32 %v615, %v645
        %v649 = vadd.f32 %v616, %v645
        %v650 = vadd.f32 %v617, %v645
        %v651 = vadd.f32 %v618, %v645
        %v652 = vadd.f32 %v619, %v645
        %v653 = vadd.f32 %v620, %v645
        %v654 = vadd.f32 %v621, %v645
        %v655 = vadd.f32 %v622, %v645
        %v656 = vadd.f32 %v623, %v645
        %v657 = vadd.f32 %v624, %v645
        %v658 = vadd.f32 %v625, %v645
        %v659 = vadd.f32 %v626, %v645
        %v660 = vadd.f32 %v627, %v645
        %v661 = vadd.f32 %v628, %v645
        %v662 = vadd.f32 %v629, %v645
        %v663 = vadd.f32 %v630, %v645
        %v664 = vadd.f32 %v631, %v645
        %v665 = vadd.f32 %v632, %v645
        %v666 = vadd.f32 %v633, %v645
        %v667 = vadd.f32 %v634, %v645
        %v668 = vadd.f32 %v635, %v645
        %v669 = vadd.f32 %v636, %v645
        %v670 = vadd.f32 %v637, %v645
        %v671 = vadd.f32 %v638, %v645
        %v672 = vadd.f32 %v639, %v645
        %v673 = vadd.f32 %v640, %v645
        %v674 = vadd.f32 %v641, %v645
        %v675 = vadd.f32 %v642, %v645
        %v676 = vadd.f32 %v643, %v645
        %v677 = vadd.f32 %v644, %v645
        %v678 = vunpack.c.l.bf16 %v259
        %v679 = vunpack.c.l.bf16 %v260
        %v680 = vunpack.c.l.bf16 %v261
        %v681 = vunpack.c.l.bf16 %v262
        %v682 = vunpack.c.l.bf16 %v263
        %v683 = vunpack.c.l.bf16 %v264
        %v684 = vunpack.c.l.bf16 %v265
        %v685 = vunpack.c.l.bf16 %v266
        %v686 = vunpack.c.l.bf16 %v267
        %v687 = vunpack.c.l.bf16 %v268
        %v688 = vunpack.c.l.bf16 %v269
        %v689 = vunpack.c.l.bf16 %v270
        %v690 = vunpack.c.l.bf16 %v271
        %v691 = vunpack.c.l.bf16 %v272
        %v692 = vunpack.c.l.bf16 %v273
        %v693 = vunpack.c.l.bf16 %v274
        %v694 = vunpack.c.l.bf16 %v275
        %v695 = vunpack.c.l.bf16 %v276
        %v696 = vunpack.c.l.bf16 %v277
        %v697 = vunpack.c.l.bf16 %v278
        %v698 = vunpack.c.l.bf16 %v279
        %v699 = vunpack.c.l.bf16 %v280
        %v700 = vunpack.c.l.bf16 %v281
        %v701 = vunpack.c.l.bf16 %v282
        %v702 = vunpack.c.l.bf16 %v283
        %v703 = vunpack.c.l.bf16 %v284
        %v704 = vunpack.c.l.bf16 %v285
        %v705 = vunpack.c.l.bf16 %v286
        %v706 = vunpack.c.l.bf16 %v287
        %v707 = vunpack.c.l.bf16 %v288
        %v708 = vunpack.c.l.bf16 %v289
        %v709 = vunpack.c.l.bf16 %v290
        %v710 = vadd.f32 %v646, %v678
        %v711 = vadd.f32 %v647, %v679
        %v712 = vadd.f32 %v648, %v680
        %v713 = vadd.f32 %v649, %v681
        %v714 = vadd.f32 %v650, %v682
        %v715 = vadd.f32 %v651, %v683
        %v716 = vadd.f32 %v652, %v684
        %v717 = vadd.f32 %v653, %v685
        %v718 = vadd.f32 %v654, %v686
        %v719 = vadd.f32 %v655, %v687
        %v720 = vadd.f32 %v656, %v688
        %v721 = vadd.f32 %v657, %v689
        %v722 = vadd.f32 %v658, %v690
        %v723 = vadd.f32 %v659, %v691
        %v724 = vadd.f32 %v660, %v692
        %v725 = vadd.f32 %v661, %v693
        %v726 = vadd.f32 %v662, %v694
        %v727 = vadd.f32 %v663, %v695
        %v728 = vadd.f32 %v664, %v696
        %v729 = vadd.f32 %v665, %v697
        %v730 = vadd.f32 %v666, %v698
        %v731 = vadd.f32 %v667, %v699
        %v732 = vadd.f32 %v668, %v700
        %v733 = vadd.f32 %v669, %v701
        %v734 = vadd.f32 %v670, %v702
        %v735 = vadd.f32 %v671, %v703
        %v736 = vadd.f32 %v672, %v704
        %v737 = vadd.f32 %v673, %v705
        %v738 = vadd.f32 %v674, %v706
        %v739 = vadd.f32 %v675, %v707
        %v740 = vadd.f32 %v676, %v708
        %v741 = vadd.f32 %v677, %v709
        %v742 = vmax.f32 %v710, 0.0
        %v743 = vmax.f32 %v711, 0.0
        %v744 = vmax.f32 %v712, 0.0
        %v745 = vmax.f32 %v713, 0.0
        %v746 = vmax.f32 %v714, 0.0
        %v747 = vmax.f32 %v715, 0.0
        %v748 = vmax.f32 %v716, 0.0
        %v749 = vmax.f32 %v717, 0.0
        %v750 = vmax.f32 %v718, 0.0
        %v751 = vmax.f32 %v719, 0.0
        %v752 = vmax.f32 %v720, 0.0
        %v753 = vmax.f32 %v721, 0.0
        %v754 = vmax.f32 %v722, 0.0
        %v755 = vmax.f32 %v723, 0.0
        %v756 = vmax.f32 %v724, 0.0
        %v757 = vmax.f32 %v725, 0.0
        %v758 = vmax.f32 %v726, 0.0
        %v759 = vmax.f32 %v727, 0.0
        %v760 = vmax.f32 %v728, 0.0
        %v761 = vmax.f32 %v729, 0.0
        %v762 = vmax.f32 %v730, 0.0
        %v763 = vmax.f32 %v731, 0.0
        %v764 = vmax.f32 %v732, 0.0
        %v765 = vmax.f32 %v733, 0.0
        %v766 = vmax.f32 %v734, 0.0
        %v767 = vmax.f32 %v735, 0.0
        %v768 = vmax.f32 %v736, 0.0
        %v769 = vmax.f32 %v737, 0.0
        %v770 = vmax.f32 %v738, 0.0
        %v771 = vmax.f32 %v739, 0.0
        %v772 = vmax.f32 %v740, 0.0
        %v773 = vmax.f32 %v741, 0.0
        %774 = vst [vmem:[%s255] sm:$0xff] %v742
        %775 = vst [vmem:[%s255 + $0x8] sm:$0xff] %v743
        %776 = vst [vmem:[%s255 + $0x10] sm:$0xff] %v744
        %777 = vst [vmem:[%s255 + $0x18] sm:$0xff] %v745
        %778 = vst [vmem:[%s255 + $0x20] sm:$0xff] %v746
        %779 = vst [vmem:[%s255 + $0x28] sm:$0xff] %v747
        %780 = vst [vmem:[%s255 + $0x30] sm:$0xff] %v748
        %781 = vst [vmem:[%s255 + $0x38] sm:$0xff] %v749
        %782 = vst [vmem:[%s255 + $0x40] sm:$0xff] %v750
        %783 = vst [vmem:[%s255 + $0x48] sm:$0xff] %v751
        %784 = vst [vmem:[%s255 + $0x50] sm:$0xff] %v752
        %785 = vst [vmem:[%s255 + $0x58] sm:$0xff] %v753
        %786 = vst [vmem:[%s255 + $0x60] sm:$0xff] %v754
        %787 = vst [vmem:[%s255 + $0x68] sm:$0xff] %v755
        %788 = vst [vmem:[%s255 + $0x70] sm:$0xff] %v756
        %789 = vst [vmem:[%s255 + $0x78] sm:$0xff] %v757
        %790 = vst [vmem:[%s255 + $0x80] sm:$0xff] %v758
        %791 = vst [vmem:[%s255 + $0x88] sm:$0xff] %v759
        %792 = vst [vmem:[%s255 + $0x90] sm:$0xff] %v760
        %793 = vst [vmem:[%s255 + $0x98] sm:$0xff] %v761
        %794 = vst [vmem:[%s255 + $0xa0] sm:$0xff] %v762
        %795 = vst [vmem:[%s255 + $0xa8] sm:$0xff] %v763
        %796 = vst [vmem:[%s255 + $0xb0] sm:$0xff] %v764
        %797 = vst [vmem:[%s255 + $0xb8] sm:$0xff] %v765
        %798 = vst [vmem:[%s255 + $0xc0] sm:$0xff] %v766
        %799 = vst [vmem:[%s255 + $0xc8] sm:$0xff] %v767
        %800 = vst [vmem:[%s255 + $0xd0] sm:$0xff] %v768
        %801 = vst [vmem:[%s255 + $0xd8] sm:$0xff] %v769
        %802 = vst [vmem:[%s255 + $0xe0] sm:$0xff] %v770
        %803 = vst [vmem:[%s255 + $0xe8] sm:$0xff] %v771
        %804 = vst [vmem:[%s255 + $0xf0] sm:$0xff] %v772
        %805 = vst [vmem:[%s255 + $0xf8] sm:$0xff] %v773
        %s806 = sand.u32 %s120, 1
        %s807 = scalar_lea.sflag [#allocation4], %s806
        %s808 = sand.u32 %s120, 1
        %s809 = smul.addr %s808, 256
        %s810 = scalar_lea.vmem [#allocation10], %s809
        // Predicated region
        $region53: #{tpu_custom_call.1} parent=35 // pred_check
          %p811 = pneg %p130
        $region54: #{tpu_custom_call.1} parent=35 // pred_check_branch
          %813 = sbr.rel (%p811) target = $region56
        $region55: #{tpu_custom_call.1} parent=35 // pred_region
          %s814 = smul.u32 32, %s23
          %s816 = ssub.s32 4096, 4096
          %817 = vsyncadd %s807, %s816
          %s818 = smul.addr %s814, 128
          %s819 = scalar_lea.hbm %s4, %s818
          %s820 = sshll.u32 %s810, 4
          %s821 = int_to_ptr.vmem [resolvable:$true] %s820
          %826 = dma.vmem_to_hbm [thread:$0]  %s821, 4096, %s819, %s807, 128, 128, 8
        $region56: #{tpu_custom_call.1} parent=35 // pred_fallthru
          _
      $region36: #{tpu_custom_call.1} parent=5 // pred_fallthru
        _
      %p827 = scmp.le.s32.totalorder 2, %s18
      // Predicated region
      $region57: #{tpu_custom_call.1} parent=5 // pred_check
        %p828 = pneg %p827
      $region58: #{tpu_custom_call.1} parent=5 // pred_check_branch
        %830 = sbr.rel (%p828) target = $region60
      $region59: #{tpu_custom_call.1} parent=5 // pred_region
        %s831 = ssub.s32 %s18, 2
        // Predicated region
        $region61: #{tpu_custom_call.1} parent=59 // pred_check
          %p832 = pneg %p136
        $region62: #{tpu_custom_call.1} parent=59 // pred_check_branch
          %834 = sbr.rel (%p832) target = $region64
        $region63: #{tpu_custom_call.1} parent=59 // pred_region
          %s835 = sand.u32 %s121, 1
          %s836 = scalar_lea.sflag [#allocation4], %s835
          %s837 = sand.u32 %s121, 1
          %s838 = smul.addr %s837, 256
          %s839 = scalar_lea.vmem [#allocation10], %s838
          %840 = dma.done %s836, 4096
        $region64: #{tpu_custom_call.1} parent=59 // pred_fallthru
          _
      $region60: #{tpu_custom_call.1} parent=5 // pred_fallthru
        _
    $region6: #{tpu_custom_call.1} parent=1 // loop_footer
      %s22 = sadd.s32 1, %s18
    $region7: #{tpu_custom_call.1} parent=1 // loop_footer_branch
      %17 = sbr.rel target = $region3
    $region8: #{tpu_custom_call.1} parent=1 // loop_exit
      _
    %841 = vsyncpa [#allocation3], 1
    %s842 = scalar_lea.sflag [#allocation3], 1
    %843 = vsyncpa %s842, 1
    %844 = vsyncpa [#allocation6], 1
    %845 = vsyncpa [#allocation9], 1
    %846 = vsyncpa [#allocation4], 1
    %s847 = scalar_lea.sflag [#allocation4], 1
    %848 = vsyncpa %s847, 1

</llo_original>
